<compile_context>
chip_gen: v7x
topology: tpu7x:2x2x1
jax: 0.10.0
libtpu: 0.0.40
codegen_flags: <defaults>
</compile_context>

<pallas_src>
import jax
import jax.numpy as jnp
from jax.experimental import pallas as pl
from jax.experimental.pallas import tpu as pltpu

LANE = 128        # TPU lane width — hidden feature dims padded to this
D_IN = 20         # real input feature width
D_IN_PAD = 32     # input padded only to 32 columns (full-dim block => legal)
N_OUT = 7         # packed real output cols: [age(1) | gender(2) | handed(2) | class(2)]
MAX_TILE_B = 1024 # upper bound on batch tile rows
BN_EPS = 1e-5

HEADS = (("age", 1), ("gender", 2), ("handedness", 2), ("class", 2))

# Row layout of the packed (16,128) f32 vector operand.
_VROW = {"b1": 0, "s1": 1, "t1": 2, "b2": 3, "s2": 4, "t2": 5,
         "b3": 6, "bh1": 7, "bh2": 8}


# ----------------------------------------------------------------------------
# Pallas kernel: fused shared trunk + all four heads (one batch tile)
# ----------------------------------------------------------------------------
def _model2_kernel(x_ref, w1_ref, wstk_ref, vec_ref, o_ref):
    f32 = jnp.float32
    bf16 = jnp.bfloat16

    x = x_ref[...]                                        # (TILE_B, 32) bf16

    b1 = vec_ref[0:1, :]
    s1 = vec_ref[1:2, :]
    t1 = vec_ref[2:3, :]
    b2 = vec_ref[3:4, :]
    s2 = vec_ref[4:5, :]
    t2 = vec_ref[5:6, :]
    b3 = vec_ref[6:7, :]
    bh1 = vec_ref[7:8, :]
    bh2 = vec_ref[8:9, :]

    # Linear(20,128) -> ReLU -> BatchNorm1d(128) (folded) -> Dropout(identity)
    h = jnp.dot(x, w1_ref[...], preferred_element_type=f32) + b1
    h = jnp.maximum(h, 0.0)
    h = h * s1 + t1

    # Linear(128,64) -> ReLU -> BatchNorm1d(64) (folded) -> Dropout(identity)
    h = jnp.dot(h.astype(bf16), wstk_ref[0], preferred_element_type=f32) + b2
    h = jnp.maximum(h, 0.0)
    h = h * s2 + t2

    # Linear(64,32) -> ReLU   (shared features)
    h = jnp.dot(h.astype(bf16), wstk_ref[1], preferred_element_type=f32) + b3
    h = jnp.maximum(h, 0.0)

    # Heads stage 1: four Linear(32,16)+ReLU stacked along lanes (4*16 = 64 cols)
    g = jnp.dot(h.astype(bf16), wstk_ref[2], preferred_element_type=f32) + bh1
    g = jnp.maximum(g, 0.0)

    # Heads stage 2: block-diagonal Linear(16,out) for all heads -> 7 real cols
    y = jnp.dot(g.astype(bf16), wstk_ref[3], preferred_element_type=f32) + bh2

    o_ref[...] = y.astype(o_ref.dtype)                    # bf16 lane-dense store


# ----------------------------------------------------------------------------
# Tile selection: big tiles (amortize per-step overhead) but >=2 tiles when the
# batch allows (keeps both TensorCores busy on v7x megacore).
# ----------------------------------------------------------------------------
def _choose_tile(batch):
    bp = pl.cdiv(batch, 128) * 128
    if bp <= 128:
        return 128
    half = pl.cdiv(bp // 2, 128) * 128
    return min(MAX_TILE_B, max(128, half))


# ----------------------------------------------------------------------------
# Wrapper: pad to lane/tile boundaries, tile the batch, slice head outputs
# ----------------------------------------------------------------------------
def model2_forward(kparams, x):
    """kparams: dict of kernel operands (see build_kernel_operands). x: (B, 20) f32."""
    B = x.shape[0]
    tile_b = _choose_tile(B)
    n_tiles = pl.cdiv(B, tile_b)
    Bp = n_tiles * tile_b

    # Zero-pad input to (Bp, 32) bf16 (narrow pad: only 4x the real 20 cols -> 1.6x).
    x_pad = jnp.zeros((Bp, D_IN_PAD), jnp.bfloat16)
    x_pad = x_pad.at[:B, :D_IN].set(x.astype(jnp.bfloat16))

    in_specs = [
        pl.BlockSpec((tile_b, D_IN_PAD), lambda i: (i, 0)),     # x: batch-tiled
        pl.BlockSpec((D_IN_PAD, LANE), lambda i: (0, 0)),       # w1: VMEM-resident
        pl.BlockSpec((4, LANE, LANE), lambda i: (0, 0, 0)),     # stacked weights
        pl.BlockSpec((16, LANE), lambda i: (0, 0)),             # packed bias/scale/shift
    ]
    out_spec = pl.BlockSpec((tile_b, LANE), lambda i: (i, 0))   # lane-dense bf16 output

    out = pl.pallas_call(
        _model2_kernel,
        out_shape=jax.ShapeDtypeStruct((Bp, LANE), jnp.bfloat16),
        grid=(n_tiles,),
        in_specs=in_specs,
        out_specs=out_spec,
        compiler_params=pltpu.CompilerParams(dimension_semantics=("parallel",)),
    )(x_pad, kparams["w1"], kparams["wstack"], kparams["vecs"])

    out = out[:B].astype(jnp.float32)
    age = jnp.maximum(out[:, 0:1], 0.0)          # age-head final ReLU on the host
    gender = out[:, 1:3]
    handedness = out[:, 3:5]
    class_out = out[:, 5:7]
    return age, gender, handedness, class_out


# ----------------------------------------------------------------------------
# Parameter construction (f32 masters for reference; packed bf16/f32 for kernel)
# ----------------------------------------------------------------------------
def init_model2_params(key):
    def linear(k, fan_in, fan_out):
        kw, kb = jax.random.split(k)
        bound = 1.0 / jnp.sqrt(jnp.float32(fan_in))
        w = jax.random.uniform(kw, (fan_in, fan_out), jnp.float32, -bound, bound)
        b = jax.random.uniform(kb, (fan_out,), jnp.float32, -bound, bound)
        return w, b

    def bn(k, n):
        k1, k2, k3, k4 = jax.random.split(k, 4)
        gamma = jax.random.uniform(k1, (n,), jnp.float32, 0.5, 1.5)
        beta = 0.1 * jax.random.normal(k2, (n,), jnp.float32)
        mean = 0.1 * jax.random.normal(k3, (n,), jnp.float32)
        var = jax.random.uniform(k4, (n,), jnp.float32, 0.5, 1.5)
        return gamma, beta, mean, var

    keys = jax.random.split(key, 13)
    raw = {}
    raw["l1_w"], raw["l1_b"] = linear(keys[0], D_IN, 128)
    raw["bn1"] = bn(keys[1], 128)
    raw["l2_w"], raw["l2_b"] = linear(keys[2], 128, 64)
    raw["bn2"] = bn(keys[3], 64)
    raw["l3_w"], raw["l3_b"] = linear(keys[4], 64, 32)
    for i, (name, out_dim) in enumerate(HEADS):
        raw[f"{name}_w1"], raw[f"{name}_b1"] = linear(keys[5 + 2 * i], 32, 16)
        raw[f"{name}_w2"], raw[f"{name}_b2"] = linear(keys[6 + 2 * i], 16, out_dim)
    return raw


def build_kernel_operands(raw):
    def pad_mat(w, rows, cols):  # zero-pad -> (rows, cols) bf16
        out = jnp.zeros((rows, cols), jnp.float32)
        return out.at[: w.shape[0], : w.shape[1]].set(w).astype(jnp.bfloat16)

    def bn_affine(gamma, beta, mean, var):
        scale = gamma / jnp.sqrt(var + BN_EPS)
        shift = beta - mean * scale
        return scale, shift

    s1, t1 = bn_affine(*raw["bn1"])
    s2, t2 = bn_affine(*raw["bn2"])

    # Stacked head stage-1: (32, 64) and (64,)
    wh1 = jnp.concatenate([raw[f"{n}_w1"] for n, _ in HEADS], axis=1)
    bh1 = jnp.concatenate([raw[f"{n}_b1"] for n, _ in HEADS], axis=0)

    # Block-diagonal head stage-2: (64, 7) and (7,)
    wh2 = jnp.zeros((64, N_OUT), jnp.float32)
    bh2 = jnp.zeros((N_OUT,), jnp.float32)
    col = 0
    for i, (name, out_dim) in enumerate(HEADS):
        wh2 = wh2.at[16 * i: 16 * (i + 1), col: col + out_dim].set(raw[f"{name}_w2"])
        bh2 = bh2.at[col: col + out_dim].set(raw[f"{name}_b2"])
        col += out_dim

    # Packed (16,128) f32 bias/scale/shift operand (rows 9..15 are padding).
    vecs = jnp.zeros((16, LANE), jnp.float32)
    for name, v in (("b1", raw["l1_b"]), ("s1", s1), ("t1", t1),
                    ("b2", raw["l2_b"]), ("s2", s2), ("t2", t2),
                    ("b3", raw["l3_b"]), ("bh1", bh1), ("bh2", bh2)):
        vecs = vecs.at[_VROW[name], : v.shape[0]].set(v)

    # Stacked (4,128,128) bf16 weight operand: [w2, w3, wh1, wh2_blockdiag].
    wstack = jnp.stack([
        pad_mat(raw["l2_w"], LANE, LANE),
        pad_mat(raw["l3_w"], LANE, LANE),
        pad_mat(wh1, LANE, LANE),
        pad_mat(wh2, LANE, LANE),
    ], axis=0)

    return {
        "w1": pad_mat(raw["l1_w"], D_IN_PAD, LANE),   # (32, 128) bf16
        "wstack": wstack,                             # (4, 128, 128) bf16
        "vecs": vecs,                                 # (16, 128) f32
    }


# ----------------------------------------------------------------------------
# Pure-JAX reference (mirrors the PyTorch module structure, f32)
# ----------------------------------------------------------------------------
def reference_forward(raw, x):
    def bn_eval(h, gamma, beta, mean, var):
        return (h - mean) / jnp.sqrt(var + BN_EPS) * gamma + beta

    h = jnp.maximum(x @ raw["l1_w"] + raw["l1_b"], 0.0)
    h = bn_eval(h, *raw["bn1"])
    h = jnp.maximum(h @ raw["l2_w"] + raw["l2_b"], 0.0)
    h = bn_eval(h, *raw["bn2"])
    shared = jnp.maximum(h @ raw["l3_w"] + raw["l3_b"], 0.0)

    def head(name, final_relu=False):
        t = jnp.maximum(shared @ raw[f"{name}_w1"] + raw[f"{name}_b1"], 0.0)
        t = t @ raw[f"{name}_w2"] + raw[f"{name}_b2"]
        return jnp.maximum(t, 0.0) if final_relu else t

    return head("age", True), head("gender"), head("handedness"), head("class")


# ----------------------------------------------------------------------------
# Python-side "module": params + metadata (no tensor compute)
# ----------------------------------------------------------------------------
class Model2NetPallas:
    def __init__(self, key=None):
        self.model_name = "HistogramModel"
        self.version = "1.0.0"
        self.trained_at = None
        key = jax.random.PRNGKey(0) if key is None else key
        self.raw = init_model2_params(key)
        self.kparams = build_kernel_operands(self.raw)

    def forward(self, x):
        return model2_forward(self.kparams, x)

    def get_model_info(self):
        r = self.raw
        trainable = [r["l1_w"], r["l1_b"], r["bn1"][0], r["bn1"][1],
                     r["l2_w"], r["l2_b"], r["bn2"][0], r["bn2"][1],
                     r["l3_w"], r["l3_b"]]
        for name, _ in HEADS:
            trainable += [r[f"{name}_w1"], r[f"{name}_b1"],
                          r[f"{name}_w2"], r[f"{name}_b2"]]
        total = sum(int(p.size) for p in trainable)
        return {
            "name": self.model_name,
            "version": self.version,
            "total_parameters": total,
            "trainable_parameters": total,
            "trained_at": self.trained_at,
            "device": jax.devices()[0].platform,
        }


if __name__ == "__main__":
    model = Model2NetPallas()

    def check(batch, seed):
        x = jax.random.normal(jax.random.PRNGKey(seed), (batch, D_IN), jnp.float32)
        outs = jax.block_until_ready(model.forward(x))
        age, gender, handedness, class_out = outs
        assert age.shape == (batch, 1)
        assert gender.shape == (batch, 2)
        assert handedness.shape == (batch, 2)
        assert class_out.shape == (batch, 2)
        refs = reference_forward(model.raw, x)
        for got, want in zip(outs, refs):
            max_err = float(jnp.max(jnp.abs(got - want)))
            assert jnp.allclose(got, want, atol=5e-2, rtol=5e-2), max_err

    # Small primary check (single tile) and a multi-tile check (exercises the
    # >=2-tile path used for v7x megacore splitting).
    check(8, 0)
    check(300, 1)

    _ = model.get_model_info()  # metadata path, no tensor compute
    print("KERNEL_OK")
</pallas_src>

<mosaic_0001>
module attributes {stable_mosaic.version = 11 : i64} {
  func.func @_model2_kernel(%arg0: i32, %arg1: memref<128x32xbf16, #tpu.memory_space<vmem>>, %arg2: memref<32x128xbf16, #tpu.memory_space<vmem>>, %arg3: memref<4x128x128xbf16, #tpu.memory_space<vmem>>, %arg4: memref<16x128xf32, #tpu.memory_space<vmem>>, %arg5: memref<128x128xbf16, #tpu.memory_space<vmem>>) attributes {dimension_semantics = [#tpu.dimension_semantics<parallel>], iteration_bounds = array<i64: 1>, scalar_prefetch = 0 : i64, scratch_operands = 0 : i64, tpu.core_type = #tpu.core_type<tc>, window_params = [{transform_indices = @transform_0, window_bounds = array<i64: 128, 32>}, {pipeline_mode = #tpu.pipeline_mode<synchronous>, transform_indices = @transform_1, window_bounds = array<i64: 32, 128>}, {pipeline_mode = #tpu.pipeline_mode<synchronous>, transform_indices = @transform_2, window_bounds = array<i64: 4, 128, 128>}, {pipeline_mode = #tpu.pipeline_mode<synchronous>, transform_indices = @transform_3, window_bounds = array<i64: 16, 128>}, {transform_indices = @transform_4, window_bounds = array<i64: 128, 128>}]} {
    %c0 = arith.constant 0 : index
    %c0_0 = arith.constant 0 : index
    %0 = vector.load %arg1[%c0, %c0_0] : memref<128x32xbf16, #tpu.memory_space<vmem>>, vector<128x32xbf16>
    %c0_1 = arith.constant 0 : index
    %c0_2 = arith.constant 0 : index
    %1 = vector.load %arg4[%c0_1, %c0_2] : memref<16x128xf32, #tpu.memory_space<vmem>>, vector<1x128xf32>
    %c1 = arith.constant 1 : index
    %c0_3 = arith.constant 0 : index
    %2 = vector.load %arg4[%c1, %c0_3] : memref<16x128xf32, #tpu.memory_space<vmem>>, vector<1x128xf32>
    %c2 = arith.constant 2 : index
    %c0_4 = arith.constant 0 : index
    %3 = vector.load %arg4[%c2, %c0_4] : memref<16x128xf32, #tpu.memory_space<vmem>>, vector<1x128xf32>
    %c3 = arith.constant 3 : index
    %c0_5 = arith.constant 0 : index
    %4 = vector.load %arg4[%c3, %c0_5] : memref<16x128xf32, #tpu.memory_space<vmem>>, vector<1x128xf32>
    %c4 = arith.constant 4 : index
    %c0_6 = arith.constant 0 : index
    %5 = vector.load %arg4[%c4, %c0_6] : memref<16x128xf32, #tpu.memory_space<vmem>>, vector<1x128xf32>
    %c5 = arith.constant 5 : index
    %c0_7 = arith.constant 0 : index
    %6 = vector.load %arg4[%c5, %c0_7] : memref<16x128xf32, #tpu.memory_space<vmem>>, vector<1x128xf32>
    %c6 = arith.constant 6 : index
    %c0_8 = arith.constant 0 : index
    %7 = vector.load %arg4[%c6, %c0_8] : memref<16x128xf32, #tpu.memory_space<vmem>>, vector<1x128xf32>
    %c7 = arith.constant 7 : index
    %c0_9 = arith.constant 0 : index
    %8 = vector.load %arg4[%c7, %c0_9] : memref<16x128xf32, #tpu.memory_space<vmem>>, vector<1x128xf32>
    %c8 = arith.constant 8 : index
    %c0_10 = arith.constant 0 : index
    %9 = vector.load %arg4[%c8, %c0_10] : memref<16x128xf32, #tpu.memory_space<vmem>>, vector<1x128xf32>
    %c0_11 = arith.constant 0 : index
    %c0_12 = arith.constant 0 : index
    %10 = vector.load %arg2[%c0_11, %c0_12] : memref<32x128xbf16, #tpu.memory_space<vmem>>, vector<32x128xbf16>
    %cst = arith.constant dense<0.000000e+00> : vector<128x128xf32>
    %11 = tpu.matmul %0, %10, %cst {dimension_numbers = #tpu.dot_dimension_numbers<[1], [0], [0], [1], [0, 0, 1, 1], [], []>} : vector<128x32xbf16>, vector<32x128xbf16>, vector<128x128xf32> -> vector<128x128xf32>
    %12 = vector.broadcast %1 : vector<1x128xf32> to vector<128x128xf32>
    %13 = arith.addf %11, %12 : vector<128x128xf32>
    %cst_13 = arith.constant 0.000000e+00 : f32
    %14 = vector.broadcast %cst_13 : f32 to vector<128x128xf32>
    %15 = arith.maximumf %13, %14 : vector<128x128xf32>
    %16 = vector.broadcast %2 : vector<1x128xf32> to vector<128x128xf32>
    %17 = arith.mulf %15, %16 : vector<128x128xf32>
    %18 = vector.broadcast %3 : vector<1x128xf32> to vector<128x128xf32>
    %19 = arith.addf %17, %18 : vector<128x128xf32>
    %20 = arith.truncf %19 : vector<128x128xf32> to vector<128x128xbf16>
    %c0_14 = arith.constant 0 : index
    %c0_15 = arith.constant 0 : index
    %c0_16 = arith.constant 0 : index
    %21 = vector.load %arg3[%c0_14, %c0_15, %c0_16] : memref<4x128x128xbf16, #tpu.memory_space<vmem>>, vector<1x128x128xbf16>
    %22 = vector.shape_cast %21 : vector<1x128x128xbf16> to vector<128x128xbf16>
    %cst_17 = arith.constant dense<0.000000e+00> : vector<128x128xf32>
    %23 = tpu.matmul %20, %22, %cst_17 {dimension_numbers = #tpu.dot_dimension_numbers<[1], [0], [0], [1], [0, 0, 1, 1], [], []>} : vector<128x128xbf16>, vector<128x128xbf16>, vector<128x128xf32> -> vector<128x128xf32>
    %24 = vector.broadcast %4 : vector<1x128xf32> to vector<128x128xf32>
    %25 = arith.addf %23, %24 : vector<128x128xf32>
    %cst_18 = arith.constant 0.000000e+00 : f32
    %26 = vector.broadcast %cst_18 : f32 to vector<128x128xf32>
    %27 = arith.maximumf %25, %26 : vector<128x128xf32>
    %28 = vector.broadcast %5 : vector<1x128xf32> to vector<128x128xf32>
    %29 = arith.mulf %27, %28 : vector<128x128xf32>
    %30 = vector.broadcast %6 : vector<1x128xf32> to vector<128x128xf32>
    %31 = arith.addf %29, %30 : vector<128x128xf32>
    %32 = arith.truncf %31 : vector<128x128xf32> to vector<128x128xbf16>
    %c1_19 = arith.constant 1 : index
    %c0_20 = arith.constant 0 : index
    %c0_21 = arith.constant 0 : index
    %33 = vector.load %arg3[%c1_19, %c0_20, %c0_21] : memref<4x128x128xbf16, #tpu.memory_space<vmem>>, vector<1x128x128xbf16>
    %34 = vector.shape_cast %33 : vector<1x128x128xbf16> to vector<128x128xbf16>
    %cst_22 = arith.constant dense<0.000000e+00> : vector<128x128xf32>
    %35 = tpu.matmul %32, %34, %cst_22 {dimension_numbers = #tpu.dot_dimension_numbers<[1], [0], [0], [1], [0, 0, 1, 1], [], []>} : vector<128x128xbf16>, vector<128x128xbf16>, vector<128x128xf32> -> vector<128x128xf32>
    %36 = vector.broadcast %7 : vector<1x128xf32> to vector<128x128xf32>
    %37 = arith.addf %35, %36 : vector<128x128xf32>
    %cst_23 = arith.constant 0.000000e+00 : f32
    %38 = vector.broadcast %cst_23 : f32 to vector<128x128xf32>
    %39 = arith.maximumf %37, %38 : vector<128x128xf32>
    %40 = arith.truncf %39 : vector<128x128xf32> to vector<128x128xbf16>
    %c2_24 = arith.constant 2 : index
    %c0_25 = arith.constant 0 : index
    %c0_26 = arith.constant 0 : index
    %41 = vector.load %arg3[%c2_24, %c0_25, %c0_26] : memref<4x128x128xbf16, #tpu.memory_space<vmem>>, vector<1x128x128xbf16>
    %42 = vector.shape_cast %41 : vector<1x128x128xbf16> to vector<128x128xbf16>
    %cst_27 = arith.constant dense<0.000000e+00> : vector<128x128xf32>
    %43 = tpu.matmul %40, %42, %cst_27 {dimension_numbers = #tpu.dot_dimension_numbers<[1], [0], [0], [1], [0, 0, 1, 1], [], []>} : vector<128x128xbf16>, vector<128x128xbf16>, vector<128x128xf32> -> vector<128x128xf32>
    %44 = vector.broadcast %8 : vector<1x128xf32> to vector<128x128xf32>
    %45 = arith.addf %43, %44 : vector<128x128xf32>
    %cst_28 = arith.constant 0.000000e+00 : f32
    %46 = vector.broadcast %cst_28 : f32 to vector<128x128xf32>
    %47 = arith.maximumf %45, %46 : vector<128x128xf32>
    %48 = arith.truncf %47 : vector<128x128xf32> to vector<128x128xbf16>
    %c3_29 = arith.constant 3 : index
    %c0_30 = arith.constant 0 : index
    %c0_31 = arith.constant 0 : index
    %49 = vector.load %arg3[%c3_29, %c0_30, %c0_31] : memref<4x128x128xbf16, #tpu.memory_space<vmem>>, vector<1x128x128xbf16>
    %50 = vector.shape_cast %49 : vector<1x128x128xbf16> to vector<128x128xbf16>
    %cst_32 = arith.constant dense<0.000000e+00> : vector<128x128xf32>
    %51 = tpu.matmul %48, %50, %cst_32 {dimension_numbers = #tpu.dot_dimension_numbers<[1], [0], [0], [1], [0, 0, 1, 1], [], []>} : vector<128x128xbf16>, vector<128x128xbf16>, vector<128x128xf32> -> vector<128x128xf32>
    %52 = vector.broadcast %9 : vector<1x128xf32> to vector<128x128xf32>
    %53 = arith.addf %51, %52 : vector<128x128xf32>
    %54 = arith.truncf %53 : vector<128x128xf32> to vector<128x128xbf16>
    %c0_33 = arith.constant 0 : index
    %c0_34 = arith.constant 0 : index
    %55 = vector.load %arg5[%c0_33, %c0_34] : memref<128x128xbf16, #tpu.memory_space<vmem>>, vector<128x128xbf16>
    tpu.vector_store %arg5[%c0_33, %c0_34], %54 {strides = array<i32>} : memref<128x128xbf16, #tpu.memory_space<vmem>>, vector<128x128xbf16>,
    return
  }
  func.func @transform_0(%arg0: i32) -> (i32, i32) {
    %c0_i32 = arith.constant 0 : i32
    %c0_i32_0 = arith.constant 0 : i32
    return %arg0, %c0_i32 : i32, i32
  }
  func.func @transform_1(%arg0: i32) -> (i32, i32) {
    %c0_i32 = arith.constant 0 : i32
    %c0_i32_0 = arith.constant 0 : i32
    %c0_i32_1 = arith.constant 0 : i32
    return %c0_i32, %c0_i32_0 : i32, i32
  }
  func.func @transform_2(%arg0: i32) -> (i32, i32, i32) {
    %c0_i32 = arith.constant 0 : i32
    %c0_i32_0 = arith.constant 0 : i32
    %c0_i32_1 = arith.constant 0 : i32
    %c0_i32_2 = arith.constant 0 : i32
    return %c0_i32, %c0_i32_0, %c0_i32_1 : i32, i32, i32
  }
  func.func @transform_3(%arg0: i32) -> (i32, i32) {
    %c0_i32 = arith.constant 0 : i32
    %c0_i32_0 = arith.constant 0 : i32
    %c0_i32_1 = arith.constant 0 : i32
    return %c0_i32, %c0_i32_0 : i32, i32
  }
  func.func @transform_4(%arg0: i32) -> (i32, i32) {
    %c0_i32 = arith.constant 0 : i32
    %c0_i32_0 = arith.constant 0 : i32
    return %arg0, %c0_i32 : i32, i32
  }
}

</mosaic_0001>

<llo_original>
// kernel: tpu_custom_call.1
$region0: #{tpu_custom_call.1}
  #allocation0 [shape = 'u32[]', space=smem, size = 0x4, offset = 0x4, fixed_abs, tag = 'smem constant byte address 0x4 - core index']
  #allocation1 [shape = 'u32[144,128]{1,0:T(1,128)}', space=vmem, size = 0x12000, scoped, tag = 'internal scratch']
  %s0 = inlined_call_operand.vmem [shape: bf16[128,32], index: 0, kind: input, shape index: {}]
  %s1 = inlined_call_operand.vmem [shape: bf16[32,128], index: 1, kind: input, shape index: {}]
  %s2 = inlined_call_operand.hbm [shape: bf16[4,128,128], index: 2, kind: input, shape index: {}]
  %s3 = inlined_call_operand.vmem [shape: f32[16,128], index: 3, kind: input, shape index: {}]
  %s4 = inlined_call_operand.hbm [shape: bf16[128,128], index: 4, kind: output, shape index: {}]
  %s5 = sld [smem:[#allocation0]]
  $region30: #{tpu_custom_call.1} parent=0
    _
  %s7 = ssub.s32 1, %s5
  %s8 = scalar_select 0, %s7, %s5
  $region1: #{tpu_custom_call.1} parent=0
    #allocation2 [shape = 'u8[131072]{0}', space=vmem, size = 0x20000, scoped, tag = 'input window, operand 2, single buffered']
    #allocation3 [shape = 's32[1]{0}', space=sflag, size = 0x4, scoped, tag = 'scoped memory for tpu_custom_call.1']
    #allocation4 [shape = 's32[1]{0}', space=sflag, size = 0x4, scoped, tag = 'scoped memory for tpu_custom_call.1']
    #allocation5 [shape = 'u8[32768]{0}', space=vmem, size = 0x8000, scoped, tag = 'output window, operand 0, single buffered']
    %9 = vsyncpa [#allocation3], 0
    %10 = vsyncpa [#allocation4], 0
    // Predicated region
    $region2: #{tpu_custom_call.1} parent=1 // pred_check
      _
    $region3: #{tpu_custom_call.1} parent=1 // pred_check_branch
      %12 = sbr.rel (0) target = $region5
    $region4: #{tpu_custom_call.1} parent=1 // pred_region
      _
    $region5: #{tpu_custom_call.1} parent=1 // pred_fallthru
      _
    // Predicated region
    $region6: #{tpu_custom_call.1} parent=1 // pred_check
      _
    $region7: #{tpu_custom_call.1} parent=1 // pred_check_branch
      %14 = sbr.rel (0) target = $region9
    $region8: #{tpu_custom_call.1} parent=1 // pred_region
      _
    $region9: #{tpu_custom_call.1} parent=1 // pred_fallthru
      _
    // Predicated region
    $region10: #{tpu_custom_call.1} parent=1 // pred_check
      _
    $region11: #{tpu_custom_call.1} parent=1 // pred_check_branch
      %16 = sbr.rel (0) target = $region13
    $region12: #{tpu_custom_call.1} parent=1 // pred_region
      %s18 = ssub.s32 4096, 4096
      %19 = vsyncadd [#allocation3], %s18
      %s20 = sshll.u32 [#allocation2], 4
      %s21 = int_to_ptr.vmem [resolvable:$true] %s20
      %26 = dma.hbm_to_vmem [thread:$0]  %s2, 4096, %s21, [#allocation3], 64, 64, 4
    $region13: #{tpu_custom_call.1} parent=1 // pred_fallthru
      _
    // Predicated region
    $region14: #{tpu_custom_call.1} parent=1 // pred_check
      _
    $region15: #{tpu_custom_call.1} parent=1 // pred_check_branch
      %28 = sbr.rel (0) target = $region17
    $region16: #{tpu_custom_call.1} parent=1 // pred_region
      _
    $region17: #{tpu_custom_call.1} parent=1 // pred_fallthru
      _
    // Predicated region
    $region18: #{tpu_custom_call.1} parent=1 // pred_check
      _
    $region19: #{tpu_custom_call.1} parent=1 // pred_check_branch
      %30 = sbr.rel (0) target = $region21
    $region20: #{tpu_custom_call.1} parent=1 // pred_region
      %31 = dma.done [#allocation3], 4096
    $region21: #{tpu_custom_call.1} parent=1 // pred_fallthru
      _
    %v33 = vld [vmem:[%s0] sm:$0xf]
    %v34 = vld [vmem:[%s0 + $0x4] sm:$0xf]
    %v35 = vld [vmem:[%s0 + $0x8] sm:$0xf]
    %v36 = vld [vmem:[%s0 + $0xc] sm:$0xf]
    %v37 = vld [vmem:[%s0 + $0x10] sm:$0xf]
    %v38 = vld [vmem:[%s0 + $0x14] sm:$0xf]
    %v39 = vld [vmem:[%s0 + $0x18] sm:$0xf]
    %v40 = vld [vmem:[%s0 + $0x1c] sm:$0xf]
    %v41 = vld [vmem:[%s0 + $0x20] sm:$0xf]
    %v42 = vld [vmem:[%s0 + $0x24] sm:$0xf]
    %v43 = vld [vmem:[%s0 + $0x28] sm:$0xf]
    %v44 = vld [vmem:[%s0 + $0x2c] sm:$0xf]
    %v45 = vld [vmem:[%s0 + $0x30] sm:$0xf]
    %v46 = vld [vmem:[%s0 + $0x34] sm:$0xf]
    %v47 = vld [vmem:[%s0 + $0x38] sm:$0xf]
    %v48 = vld [vmem:[%s0 + $0x3c] sm:$0xf]
    %v49 = vld [vmem:[%s3] sm:$0x1]
    %v50 = vld [vmem:[%s3 + $0x1] sm:$0x1]
    %v51 = vld [vmem:[%s3 + $0x2] sm:$0x1]
    %v52 = vld [vmem:[%s3 + $0x3] sm:$0x1]
    %v53 = vld [vmem:[%s3 + $0x4] sm:$0x1]
    %v54 = vld [vmem:[%s3 + $0x5] sm:$0x1]
    %v55 = vld [vmem:[%s3 + $0x6] sm:$0x1]
    %v56 = vld [vmem:[%s3 + $0x7] sm:$0x1]
    %v57 = vld [vmem:[%s3 + $0x8] sm:$0x1]
    %v58 = vld [vmem:[%s1] sm:$0xf]
    %v59 = vld [vmem:[%s1 + $0x4] sm:$0xf]
    %v60 = vld [vmem:[%s1 + $0x8] sm:$0xf]
    %v61 = vld [vmem:[%s1 + $0xc] sm:$0xf]
    %v62 = vlaneseq
    %v63 = vshrl.u32 %v62, 7
    %v64 = vsub.s32 0, %v63
    %v65 = vrot.slane %v49, %v64
    %v82 = vunpack.c.l.b16 %v33
    %v83 = vunpack.c.l.b16 %v34
    %v84 = vunpack.c.l.b16 %v35
    %v85 = vunpack.c.l.b16 %v36
    %v86 = vunpack.c.l.b16 %v37
    %v87 = vunpack.c.l.b16 %v38
    %v88 = vunpack.c.l.b16 %v39
    %v89 = vunpack.c.l.b16 %v40
    %v90 = vunpack.c.l.b16 %v41
    %v91 = vunpack.c.l.b16 %v42
    %v92 = vunpack.c.l.b16 %v43
    %v93 = vunpack.c.l.b16 %v44
    %v94 = vunpack.c.l.b16 %v45
    %v95 = vunpack.c.l.b16 %v46
    %v96 = vunpack.c.l.b16 %v47
    %v97 = vunpack.c.l.b16 %v48
    %v98 = vpack.c.b16 %v83, %v82
    %v99 = vpack.c.b16 %v85, %v84
    %v100 = vpack.c.b16 %v87, %v86
    %v101 = vpack.c.b16 %v89, %v88
    %v102 = vpack.c.b16 %v91, %v90
    %v103 = vpack.c.b16 %v93, %v92
    %v104 = vpack.c.b16 %v95, %v94
    %v105 = vpack.c.b16 %v97, %v96
    %v110 = vunpack.c.l.b16 %v58
    %v111 = vunpack.c.l.b16 %v59
    %v112 = vunpack.c.l.b16 %v60
    %v113 = vunpack.c.l.b16 %v61
    %v114 = vpack.c.b16 %v111, %v110
    %v115 = vpack.c.b16 %v113, %v112
    %vm118 = vcmask 261120
    %v120 = vsel %vm118, %v98, 0
    %v123 = vsel %vm118, %v99, 0
    %v126 = vsel %vm118, %v100, 0
    %v129 = vsel %vm118, %v101, 0
    %v132 = vsel %vm118, %v102, 0
    %v135 = vsel %vm118, %v103, 0
    %v138 = vsel %vm118, %v104, 0
    %v141 = vsel %vm118, %v105, 0
    %143 = vmatprep.subr.bf16.mxu0 0
    %144 = vmatpush1.bf16.msra.mxu0 %v114
    %145 = vmatprep.subr.bf16.mxu0 0
    %146 = vmatpush1.bf16.msra.mxu0 %v115
    %147 = vmatprep.subr.bf16.mxu0 0
    %148 = vmatpush1.bf16.msra.mxu0 0
    %149 = vmatprep.subr.bf16.mxu0 0
    %150 = vmatpush1.bf16.msra.mxu0 0
    %151 = vmatprep.subr.bf16.mxu0 0
    %152 = vmatpush1.bf16.msra.mxu0 0
    %153 = vmatprep.subr.bf16.mxu0 0
    %154 = vmatpush1.bf16.msra.mxu0 0
    %155 = vmatprep.subr.bf16.mxu0 0
    %156 = vmatpush1.bf16.msra.mxu0 0
    %157 = vmatprep.subr.bf16.mxu0 0
    %158 = vmatpush1.bf16.msra.mxu0 0
    %159 = vmatprep.subr.bf16.mxu0 0
    %160 = vmatpush1.bf16.msra.mxu0 0
    %161 = vmatprep.subr.bf16.mxu0 0
    %162 = vmatpush1.bf16.msra.mxu0 0
    %163 = vmatprep.subr.bf16.mxu0 0
    %164 = vmatpush1.bf16.msra.mxu0 0
    %165 = vmatprep.subr.bf16.mxu0 0
    %166 = vmatpush1.bf16.msra.mxu0 0
    %167 = vmatprep.subr.bf16.mxu0 0
    %168 = vmatpush1.bf16.msra.mxu0 0
    %169 = vmatprep.subr.bf16.mxu0 0
    %170 = vmatpush1.bf16.msra.mxu0 0
    %171 = vmatprep.subr.bf16.mxu0 0
    %172 = vmatpush1.bf16.msra.mxu0 0
    %173 = vmatprep.subr.bf16.mxu0 0
    %174 = vmatpush1.bf16.msra.mxu0 0
    %175 = vmatprep.mubr.bf16.mxu0 0
    %176 = vmatmul.mubr.bf16.gmra.mrb[0].mxu0 %v120
    %v177 = vpop.f32.mrb[0].mxu0
    %v178 = vadd.f32 %v65, %v177
    %v179 = vpop.f32.mrb[0].mxu0
    %v180 = vpop.f32.mrb[0].mxu0
    %v181 = vadd.f32 %v65, %v180
    %v182 = vpop.f32.mrb[0].mxu0
    %183 = vmatprep.mubr.bf16.mxu0 0
    %184 = vmatmul.mubr.bf16.gmra.mrb[0].mxu0 %v123
    %v185 = vpop.f32.mrb[0].mxu0
    %v186 = vadd.f32 %v65, %v185
    %v187 = vpop.f32.mrb[0].mxu0
    %v188 = vpop.f32.mrb[0].mxu0
    %v189 = vadd.f32 %v65, %v188
    %v190 = vpop.f32.mrb[0].mxu0
    %191 = vmatprep.mubr.bf16.mxu0 0
    %192 = vmatmul.mubr.bf16.gmra.mrb[0].mxu0 %v126
    %v193 = vpop.f32.mrb[0].mxu0
    %v194 = vadd.f32 %v65, %v193
    %v195 = vpop.f32.mrb[0].mxu0
    %v196 = vpop.f32.mrb[0].mxu0
    %v197 = vadd.f32 %v65, %v196
    %v198 = vpop.f32.mrb[0].mxu0
    %199 = vmatprep.mubr.bf16.mxu0 0
    %200 = vmatmul.mubr.bf16.gmra.mrb[0].mxu0 %v129
    %v201 = vpop.f32.mrb[0].mxu0
    %v202 = vadd.f32 %v65, %v201
    %v203 = vpop.f32.mrb[0].mxu0
    %v204 = vpop.f32.mrb[0].mxu0
    %v205 = vadd.f32 %v65, %v204
    %v206 = vpop.f32.mrb[0].mxu0
    %207 = vmatprep.mubr.bf16.mxu0 0
    %208 = vmatmul.mubr.bf16.gmra.mrb[0].mxu0 %v132
    %v209 = vpop.f32.mrb[0].mxu0
    %v210 = vadd.f32 %v65, %v209
    %v211 = vpop.f32.mrb[0].mxu0
    %v212 = vpop.f32.mrb[0].mxu0
    %v213 = vadd.f32 %v65, %v212
    %v214 = vpop.f32.mrb[0].mxu0
    %215 = vmatprep.mubr.bf16.mxu0 0
    %216 = vmatmul.mubr.bf16.gmra.mrb[0].mxu0 %v135
    %v217 = vpop.f32.mrb[0].mxu0
    %v218 = vadd.f32 %v65, %v217
    %v219 = vpop.f32.mrb[0].mxu0
    %v220 = vpop.f32.mrb[0].mxu0
    %v221 = vadd.f32 %v65, %v220
    %v222 = vpop.f32.mrb[0].mxu0
    %223 = vmatprep.mubr.bf16.mxu0 0
    %224 = vmatmul.mubr.bf16.gmra.mrb[0].mxu0 %v138
    %v225 = vpop.f32.mrb[0].mxu0
    %v226 = vadd.f32 %v65, %v225
    %v227 = vpop.f32.mrb[0].mxu0
    %v228 = vpop.f32.mrb[0].mxu0
    %v229 = vadd.f32 %v65, %v228
    %v230 = vpop.f32.mrb[0].mxu0
    %231 = vmatprep.mubr.bf16.mxu0 0
    %232 = vmatmul.mubr.bf16.gmra.mrb[0].mxu0 %v141
    %v233 = vpop.f32.mrb[0].mxu0
    %v234 = vadd.f32 %v65, %v233
    %v235 = vpop.f32.mrb[0].mxu0
    %v236 = vpop.f32.mrb[0].mxu0
    %v237 = vadd.f32 %v65, %v236
    %v238 = vpop.f32.mrb[0].mxu0
    %239 = vdwg.mxu0
    %v240 = vmax.f32 %v178, 0.0
    %v241 = vmax.f32 %v181, 0.0
    %v242 = vmax.f32 %v186, 0.0
    %v243 = vmax.f32 %v189, 0.0
    %v244 = vmax.f32 %v194, 0.0
    %v245 = vmax.f32 %v197, 0.0
    %v246 = vmax.f32 %v202, 0.0
    %v247 = vmax.f32 %v205, 0.0
    %v248 = vmax.f32 %v210, 0.0
    %v249 = vmax.f32 %v213, 0.0
    %v250 = vmax.f32 %v218, 0.0
    %v251 = vmax.f32 %v221, 0.0
    %v252 = vmax.f32 %v226, 0.0
    %v253 = vmax.f32 %v229, 0.0
    %v254 = vmax.f32 %v234, 0.0
    %v255 = vmax.f32 %v237, 0.0
    %v256 = vlaneseq
    %v257 = vshrl.u32 %v256, 7
    %v258 = vsub.s32 0, %v257
    %v259 = vrot.slane %v50, %v258
    %v260 = vmul.f32 %v240, %v259
    %v261 = vmul.f32 %v241, %v259
    %v262 = vmul.f32 %v242, %v259
    %v263 = vmul.f32 %v243, %v259
    %v264 = vmul.f32 %v244, %v259
    %v265 = vmul.f32 %v245, %v259
    %v266 = vmul.f32 %v246, %v259
    %v267 = vmul.f32 %v247, %v259
    %v268 = vmul.f32 %v248, %v259
    %v269 = vmul.f32 %v249, %v259
    %v270 = vmul.f32 %v250, %v259
    %v271 = vmul.f32 %v251, %v259
    %v272 = vmul.f32 %v252, %v259
    %v273 = vmul.f32 %v253, %v259
    %v274 = vmul.f32 %v254, %v259
    %v275 = vmul.f32 %v255, %v259
    %v276 = vlaneseq
    %v277 = vshrl.u32 %v276, 7
    %v278 = vsub.s32 0, %v277
    %v279 = vrot.slane %v51, %v278
    %v280 = vadd.f32 %v260, %v279
    %v281 = vadd.f32 %v261, %v279
    %v282 = vadd.f32 %v262, %v279
    %v283 = vadd.f32 %v263, %v279
    %v284 = vadd.f32 %v264, %v279
    %v285 = vadd.f32 %v265, %v279
    %v286 = vadd.f32 %v266, %v279
    %v287 = vadd.f32 %v267, %v279
    %v288 = vadd.f32 %v268, %v279
    %v289 = vadd.f32 %v269, %v279
    %v290 = vadd.f32 %v270, %v279
    %v291 = vadd.f32 %v271, %v279
    %v292 = vadd.f32 %v272, %v279
    %v293 = vadd.f32 %v273, %v279
    %v294 = vadd.f32 %v274, %v279
    %v295 = vadd.f32 %v275, %v279
    %v296 = vpack.c.bf16 %v281, %v280
    %v297 = vpack.c.bf16 %v283, %v282
    %v298 = vpack.c.bf16 %v285, %v284
    %v299 = vpack.c.bf16 %v287, %v286
    %v300 = vpack.c.bf16 %v289, %v288
    %v301 = vpack.c.bf16 %v291, %v290
    %v302 = vpack.c.bf16 %v293, %v292
    %v303 = vpack.c.bf16 %v295, %v294
    %v304 = vld [vmem:[#allocation2] sm:$0xf]
    %v305 = vld [vmem:[#allocation2 + $0x4] sm:$0xf]
    %v306 = vld [vmem:[#allocation2 + $0x8] sm:$0xf]
    %v307 = vld [vmem:[#allocation2 + $0xc] sm:$0xf]
    %v308 = vld [vmem:[#allocation2 + $0x10] sm:$0xf]
    %v309 = vld [vmem:[#allocation2 + $0x14] sm:$0xf]
    %v310 = vld [vmem:[#allocation2 + $0x18] sm:$0xf]
    %v311 = vld [vmem:[#allocation2 + $0x1c] sm:$0xf]
    %v312 = vld [vmem:[#allocation2 + $0x20] sm:$0xf]
    %v313 = vld [vmem:[#allocation2 + $0x24] sm:$0xf]
    %v314 = vld [vmem:[#allocation2 + $0x28] sm:$0xf]
    %v315 = vld [vmem:[#allocation2 + $0x2c] sm:$0xf]
    %v316 = vld [vmem:[#allocation2 + $0x30] sm:$0xf]
    %v317 = vld [vmem:[#allocation2 + $0x34] sm:$0xf]
    %v318 = vld [vmem:[#allocation2 + $0x38] sm:$0xf]
    %v319 = vld [vmem:[#allocation2 + $0x3c] sm:$0xf]
    %v320 = vlaneseq
    %v321 = vshrl.u32 %v320, 7
    %v322 = vsub.s32 0, %v321
    %v323 = vrot.slane %v52, %v322
    %v340 = vunpack.c.l.b16 %v304
    %v341 = vunpack.c.l.b16 %v305
    %v342 = vunpack.c.l.b16 %v306
    %v343 = vunpack.c.l.b16 %v307
    %v344 = vunpack.c.l.b16 %v308
    %v345 = vunpack.c.l.b16 %v309
    %v346 = vunpack.c.l.b16 %v310
    %v347 = vunpack.c.l.b16 %v311
    %v348 = vunpack.c.l.b16 %v312
    %v349 = vunpack.c.l.b16 %v313
    %v350 = vunpack.c.l.b16 %v314
    %v351 = vunpack.c.l.b16 %v315
    %v352 = vunpack.c.l.b16 %v316
    %v353 = vunpack.c.l.b16 %v317
    %v354 = vunpack.c.l.b16 %v318
    %v355 = vunpack.c.l.b16 %v319
    %v356 = vpack.c.b16 %v341, %v340
    %v357 = vpack.c.b16 %v343, %v342
    %v358 = vpack.c.b16 %v345, %v344
    %v359 = vpack.c.b16 %v347, %v346
    %v360 = vpack.c.b16 %v349, %v348
    %v361 = vpack.c.b16 %v351, %v350
    %v362 = vpack.c.b16 %v353, %v352
    %v363 = vpack.c.b16 %v355, %v354
    %372 = vmatprep.subr.bf16.mxu0 0
    %373 = vmatpush1.bf16.msra.mxu0 %v356
    %374 = vmatprep.subr.bf16.mxu0 0
    %375 = vmatpush1.bf16.msra.mxu0 %v357
    %376 = vmatprep.subr.bf16.mxu0 0
    %377 = vmatpush1.bf16.msra.mxu0 %v358
    %378 = vmatprep.subr.bf16.mxu0 0
    %379 = vmatpush1.bf16.msra.mxu0 %v359
    %380 = vmatprep.subr.bf16.mxu0 0
    %381 = vmatpush1.bf16.msra.mxu0 %v360
    %382 = vmatprep.subr.bf16.mxu0 0
    %383 = vmatpush1.bf16.msra.mxu0 %v361
    %384 = vmatprep.subr.bf16.mxu0 0
    %385 = vmatpush1.bf16.msra.mxu0 %v362
    %386 = vmatprep.subr.bf16.mxu0 0
    %387 = vmatpush1.bf16.msra.mxu0 %v363
    %388 = vmatprep.subr.bf16.mxu0 0
    %389 = vmatpush1.bf16.msra.mxu0 0
    %390 = vmatprep.subr.bf16.mxu0 0
    %391 = vmatpush1.bf16.msra.mxu0 0
    %392 = vmatprep.subr.bf16.mxu0 0
    %393 = vmatpush1.bf16.msra.mxu0 0
    %394 = vmatprep.subr.bf16.mxu0 0
    %395 = vmatpush1.bf16.msra.mxu0 0
    %396 = vmatprep.subr.bf16.mxu0 0
    %397 = vmatpush1.bf16.msra.mxu0 0
    %398 = vmatprep.subr.bf16.mxu0 0
    %399 = vmatpush1.bf16.msra.mxu0 0
    %400 = vmatprep.subr.bf16.mxu0 0
    %401 = vmatpush1.bf16.msra.mxu0 0
    %402 = vmatprep.subr.bf16.mxu0 0
    %403 = vmatpush1.bf16.msra.mxu0 0
    %404 = vmatprep.mubr.bf16.mxu0 0
    %405 = vmatmul.mubr.bf16.gmra.mrb[0].mxu0 %v296
    %v406 = vpop.f32.mrb[0].mxu0
    %v407 = vadd.f32 %v323, %v406
    %v408 = vpop.f32.mrb[0].mxu0
    %v409 = vpop.f32.mrb[0].mxu0
    %v410 = vadd.f32 %v323, %v409
    %v411 = vpop.f32.mrb[0].mxu0
    %412 = vmatprep.mubr.bf16.mxu0 0
    %413 = vmatmul.mubr.bf16.gmra.mrb[0].mxu0 %v297
    %v414 = vpop.f32.mrb[0].mxu0
    %v415 = vadd.f32 %v323, %v414
    %v416 = vpop.f32.mrb[0].mxu0
    %v417 = vpop.f32.mrb[0].mxu0
    %v418 = vadd.f32 %v323, %v417
    %v419 = vpop.f32.mrb[0].mxu0
    %420 = vmatprep.mubr.bf16.mxu0 0
    %421 = vmatmul.mubr.bf16.gmra.mrb[0].mxu0 %v298
    %v422 = vpop.f32.mrb[0].mxu0
    %v423 = vadd.f32 %v323, %v422
    %v424 = vpop.f32.mrb[0].mxu0
    %v425 = vpop.f32.mrb[0].mxu0
    %v426 = vadd.f32 %v323, %v425
    %v427 = vpop.f32.mrb[0].mxu0
    %428 = vmatprep.mubr.bf16.mxu0 0
    %429 = vmatmul.mubr.bf16.gmra.mrb[0].mxu0 %v299
    %v430 = vpop.f32.mrb[0].mxu0
    %v431 = vadd.f32 %v323, %v430
    %v432 = vpop.f32.mrb[0].mxu0
    %v433 = vpop.f32.mrb[0].mxu0
    %v434 = vadd.f32 %v323, %v433
    %v435 = vpop.f32.mrb[0].mxu0
    %436 = vmatprep.mubr.bf16.mxu0 0
    %437 = vmatmul.mubr.bf16.gmra.mrb[0].mxu0 %v300
    %v438 = vpop.f32.mrb[0].mxu0
    %v439 = vadd.f32 %v323, %v438
    %v440 = vpop.f32.mrb[0].mxu0
    %v441 = vpop.f32.mrb[0].mxu0
    %v442 = vadd.f32 %v323, %v441
    %v443 = vpop.f32.mrb[0].mxu0
    %444 = vmatprep.mubr.bf16.mxu0 0
    %445 = vmatmul.mubr.bf16.gmra.mrb[0].mxu0 %v301
    %v446 = vpop.f32.mrb[0].mxu0
    %v447 = vadd.f32 %v323, %v446
    %v448 = vpop.f32.mrb[0].mxu0
    %v449 = vpop.f32.mrb[0].mxu0
    %v450 = vadd.f32 %v323, %v449
    %v451 = vpop.f32.mrb[0].mxu0
    %452 = vmatprep.mubr.bf16.mxu0 0
    %453 = vmatmul.mubr.bf16.gmra.mrb[0].mxu0 %v302
    %v454 = vpop.f32.mrb[0].mxu0
    %v455 = vadd.f32 %v323, %v454
    %v456 = vpop.f32.mrb[0].mxu0
    %v457 = vpop.f32.mrb[0].mxu0
    %v458 = vadd.f32 %v323, %v457
    %v459 = vpop.f32.mrb[0].mxu0
    %460 = vmatprep.mubr.bf16.mxu0 0
    %461 = vmatmul.mubr.bf16.gmra.mrb[0].mxu0 %v303
    %v462 = vpop.f32.mrb[0].mxu0
    %v463 = vadd.f32 %v323, %v462
    %v464 = vpop.f32.mrb[0].mxu0
    %v465 = vpop.f32.mrb[0].mxu0
    %v466 = vadd.f32 %v323, %v465
    %v467 = vpop.f32.mrb[0].mxu0
    %468 = vdwg.mxu0
    %v469 = vmax.f32 %v407, 0.0
    %v470 = vmax.f32 %v410, 0.0
    %v471 = vmax.f32 %v415, 0.0
    %v472 = vmax.f32 %v418, 0.0
    %v473 = vmax.f32 %v423, 0.0
    %v474 = vmax.f32 %v426, 0.0
    %v475 = vmax.f32 %v431, 0.0
    %v476 = vmax.f32 %v434, 0.0
    %v477 = vmax.f32 %v439, 0.0
    %v478 = vmax.f32 %v442, 0.0
    %v479 = vmax.f32 %v447, 0.0
    %v480 = vmax.f32 %v450, 0.0
    %v481 = vmax.f32 %v455, 0.0
    %v482 = vmax.f32 %v458, 0.0
    %v483 = vmax.f32 %v463, 0.0
    %v484 = vmax.f32 %v466, 0.0
    %v485 = vlaneseq
    %v486 = vshrl.u32 %v485, 7
    %v487 = vsub.s32 0, %v486
    %v488 = vrot.slane %v53, %v487
    %v489 = vmul.f32 %v469, %v488
    %v490 = vmul.f32 %v470, %v488
    %v491 = vmul.f32 %v471, %v488
    %v492 = vmul.f32 %v472, %v488
    %v493 = vmul.f32 %v473, %v488
    %v494 = vmul.f32 %v474, %v488
    %v495 = vmul.f32 %v475, %v488
    %v496 = vmul.f32 %v476, %v488
    %v497 = vmul.f32 %v477, %v488
    %v498 = vmul.f32 %v478, %v488
    %v499 = vmul.f32 %v479, %v488
    %v500 = vmul.f32 %v480, %v488
    %v501 = vmul.f32 %v481, %v488
    %v502 = vmul.f32 %v482, %v488
    %v503 = vmul.f32 %v483, %v488
    %v504 = vmul.f32 %v484, %v488
    %v505 = vlaneseq
    %v506 = vshrl.u32 %v505, 7
    %v507 = vsub.s32 0, %v506
    %v508 = vrot.slane %v54, %v507
    %v509 = vadd.f32 %v489, %v508
    %v510 = vadd.f32 %v490, %v508
    %v511 = vadd.f32 %v491, %v508
    %v512 = vadd.f32 %v492, %v508
    %v513 = vadd.f32 %v493, %v508
    %v514 = vadd.f32 %v494, %v508
    %v515 = vadd.f32 %v495, %v508
    %v516 = vadd.f32 %v496, %v508
    %v517 = vadd.f32 %v497, %v508
    %v518 = vadd.f32 %v498, %v508
    %v519 = vadd.f32 %v499, %v508
    %v520 = vadd.f32 %v500, %v508
    %v521 = vadd.f32 %v501, %v508
    %v522 = vadd.f32 %v502, %v508
    %v523 = vadd.f32 %v503, %v508
    %v524 = vadd.f32 %v504, %v508
    %v525 = vpack.c.bf16 %v510, %v509
    %v526 = vpack.c.bf16 %v512, %v511
    %v527 = vpack.c.bf16 %v514, %v513
    %v528 = vpack.c.bf16 %v516, %v515
    %v529 = vpack.c.bf16 %v518, %v517
    %v530 = vpack.c.bf16 %v520, %v519
    %v531 = vpack.c.bf16 %v522, %v521
    %v532 = vpack.c.bf16 %v524, %v523
    %s533 = scalar_lea.vmem [#allocation2], 64
    %v534 = vld [vmem:[%s533] sm:$0xf]
    %v535 = vld [vmem:[%s533 + $0x4] sm:$0xf]
    %v536 = vld [vmem:[%s533 + $0x8] sm:$0xf]
    %v537 = vld [vmem:[%s533 + $0xc] sm:$0xf]
    %v538 = vld [vmem:[%s533 + $0x10] sm:$0xf]
    %v539 = vld [vmem:[%s533 + $0x14] sm:$0xf]
    %v540 = vld [vmem:[%s533 + $0x18] sm:$0xf]
    %v541 = vld [vmem:[%s533 + $0x1c] sm:$0xf]
    %v542 = vld [vmem:[%s533 + $0x20] sm:$0xf]
    %v543 = vld [vmem:[%s533 + $0x24] sm:$0xf]
    %v544 = vld [vmem:[%s533 + $0x28] sm:$0xf]
    %v545 = vld [vmem:[%s533 + $0x2c] sm:$0xf]
    %v546 = vld [vmem:[%s533 + $0x30] sm:$0xf]
    %v547 = vld [vmem:[%s533 + $0x34] sm:$0xf]
    %v548 = vld [vmem:[%s533 + $0x38] sm:$0xf]
    %v549 = vld [vmem:[%s533 + $0x3c] sm:$0xf]
    %v550 = vlaneseq
    %v551 = vshrl.u32 %v550, 7
    %v552 = vsub.s32 0, %v551
    %v553 = vrot.slane %v55, %v552
    %v570 = vunpack.c.l.b16 %v534
    %v571 = vunpack.c.l.b16 %v535
    %v572 = vunpack.c.l.b16 %v536
    %v573 = vunpack.c.l.b16 %v537
    %v574 = vunpack.c.l.b16 %v538
    %v575 = vunpack.c.l.b16 %v539
    %v576 = vunpack.c.l.b16 %v540
    %v577 = vunpack.c.l.b16 %v541
    %v578 = vunpack.c.l.b16 %v542
    %v579 = vunpack.c.l.b16 %v543
    %v580 = vunpack.c.l.b16 %v544
    %v581 = vunpack.c.l.b16 %v545
    %v582 = vunpack.c.l.b16 %v546
    %v583 = vunpack.c.l.b16 %v547
    %v584 = vunpack.c.l.b16 %v548
    %v585 = vunpack.c.l.b16 %v549
    %v586 = vpack.c.b16 %v571, %v570
    %v587 = vpack.c.b16 %v573, %v572
    %v588 = vpack.c.b16 %v575, %v574
    %v589 = vpack.c.b16 %v577, %v576
    %v590 = vpack.c.b16 %v579, %v578
    %v591 = vpack.c.b16 %v581, %v580
    %v592 = vpack.c.b16 %v583, %v582
    %v593 = vpack.c.b16 %v585, %v584
    %602 = vmatprep.subr.bf16.mxu0 0
    %603 = vmatpush1.bf16.msra.mxu0 %v586
    %604 = vmatprep.subr.bf16.mxu0 0
    %605 = vmatpush1.bf16.msra.mxu0 %v587
    %606 = vmatprep.subr.bf16.mxu0 0
    %607 = vmatpush1.bf16.msra.mxu0 %v588
    %608 = vmatprep.subr.bf16.mxu0 0
    %609 = vmatpush1.bf16.msra.mxu0 %v589
    %610 = vmatprep.subr.bf16.mxu0 0
    %611 = vmatpush1.bf16.msra.mxu0 %v590
    %612 = vmatprep.subr.bf16.mxu0 0
    %613 = vmatpush1.bf16.msra.mxu0 %v591
    %614 = vmatprep.subr.bf16.mxu0 0
    %615 = vmatpush1.bf16.msra.mxu0 %v592
    %616 = vmatprep.subr.bf16.mxu0 0
    %617 = vmatpush1.bf16.msra.mxu0 %v593
    %618 = vmatprep.subr.bf16.mxu0 0
    %619 = vmatpush1.bf16.msra.mxu0 0
    %620 = vmatprep.subr.bf16.mxu0 0
    %621 = vmatpush1.bf16.msra.mxu0 0
    %622 = vmatprep.subr.bf16.mxu0 0
    %623 = vmatpush1.bf16.msra.mxu0 0
    %624 = vmatprep.subr.bf16.mxu0 0
    %625 = vmatpush1.bf16.msra.mxu0 0
    %626 = vmatprep.subr.bf16.mxu0 0
    %627 = vmatpush1.bf16.msra.mxu0 0
    %628 = vmatprep.subr.bf16.mxu0 0
    %629 = vmatpush1.bf16.msra.mxu0 0
    %630 = vmatprep.subr.bf16.mxu0 0
    %631 = vmatpush1.bf16.msra.mxu0 0
    %632 = vmatprep.subr.bf16.mxu0 0
    %633 = vmatpush1.bf16.msra.mxu0 0
    %634 = vmatprep.mubr.bf16.mxu0 0
    %635 = vmatmul.mubr.bf16.gmra.mrb[0].mxu0 %v525
    %v636 = vpop.f32.mrb[0].mxu0
    %v637 = vadd.f32 %v553, %v636
    %v638 = vpop.f32.mrb[0].mxu0
    %v639 = vpop.f32.mrb[0].mxu0
    %v640 = vadd.f32 %v553, %v639
    %v641 = vpop.f32.mrb[0].mxu0
    %642 = vmatprep.mubr.bf16.mxu0 0
    %643 = vmatmul.mubr.bf16.gmra.mrb[0].mxu0 %v526
    %v644 = vpop.f32.mrb[0].mxu0
    %v645 = vadd.f32 %v553, %v644
    %v646 = vpop.f32.mrb[0].mxu0
    %v647 = vpop.f32.mrb[0].mxu0
    %v648 = vadd.f32 %v553, %v647
    %v649 = vpop.f32.mrb[0].mxu0
    %650 = vmatprep.mubr.bf16.mxu0 0
    %651 = vmatmul.mubr.bf16.gmra.mrb[0].mxu0 %v527
    %v652 = vpop.f32.mrb[0].mxu0
    %v653 = vadd.f32 %v553, %v652
    %v654 = vpop.f32.mrb[0].mxu0
    %v655 = vpop.f32.mrb[0].mxu0
    %v656 = vadd.f32 %v553, %v655
    %v657 = vpop.f32.mrb[0].mxu0
    %658 = vmatprep.mubr.bf16.mxu0 0
    %659 = vmatmul.mubr.bf16.gmra.mrb[0].mxu0 %v528
    %v660 = vpop.f32.mrb[0].mxu0
    %v661 = vadd.f32 %v553, %v660
    %v662 = vpop.f32.mrb[0].mxu0
    %v663 = vpop.f32.mrb[0].mxu0
    %v664 = vadd.f32 %v553, %v663
    %v665 = vpop.f32.mrb[0].mxu0
    %666 = vmatprep.mubr.bf16.mxu0 0
    %667 = vmatmul.mubr.bf16.gmra.mrb[0].mxu0 %v529
    %v668 = vpop.f32.mrb[0].mxu0
    %v669 = vadd.f32 %v553, %v668
    %v670 = vpop.f32.mrb[0].mxu0
    %v671 = vpop.f32.mrb[0].mxu0
    %v672 = vadd.f32 %v553, %v671
    %v673 = vpop.f32.mrb[0].mxu0
    %674 = vmatprep.mubr.bf16.mxu0 0
    %675 = vmatmul.mubr.bf16.gmra.mrb[0].mxu0 %v530
    %v676 = vpop.f32.mrb[0].mxu0
    %v677 = vadd.f32 %v553, %v676
    %v678 = vpop.f32.mrb[0].mxu0
    %v679 = vpop.f32.mrb[0].mxu0
    %v680 = vadd.f32 %v553, %v679
    %v681 = vpop.f32.mrb[0].mxu0
    %682 = vmatprep.mubr.bf16.mxu0 0
    %683 = vmatmul.mubr.bf16.gmra.mrb[0].mxu0 %v531
    %v684 = vpop.f32.mrb[0].mxu0
    %v685 = vadd.f32 %v553, %v684
    %v686 = vpop.f32.mrb[0].mxu0
    %v687 = vpop.f32.mrb[0].mxu0
    %v688 = vadd.f32 %v553, %v687
    %v689 = vpop.f32.mrb[0].mxu0
    %690 = vmatprep.mubr.bf16.mxu0 0
    %691 = vmatmul.mubr.bf16.gmra.mrb[0].mxu0 %v532
    %v692 = vpop.f32.mrb[0].mxu0
    %v693 = vadd.f32 %v553, %v692
    %v694 = vpop.f32.mrb[0].mxu0
    %v695 = vpop.f32.mrb[0].mxu0
    %v696 = vadd.f32 %v553, %v695
    %v697 = vpop.f32.mrb[0].mxu0
    %698 = vdwg.mxu0
    %v699 = vmax.f32 %v637, 0.0
    %v700 = vmax.f32 %v640, 0.0
    %v701 = vmax.f32 %v645, 0.0
    %v702 = vmax.f32 %v648, 0.0
    %v703 = vmax.f32 %v653, 0.0
    %v704 = vmax.f32 %v656, 0.0
    %v705 = vmax.f32 %v661, 0.0
    %v706 = vmax.f32 %v664, 0.0
    %v707 = vmax.f32 %v669, 0.0
    %v708 = vmax.f32 %v672, 0.0
    %v709 = vmax.f32 %v677, 0.0
    %v710 = vmax.f32 %v680, 0.0
    %v711 = vmax.f32 %v685, 0.0
    %v712 = vmax.f32 %v688, 0.0
    %v713 = vmax.f32 %v693, 0.0
    %v714 = vmax.f32 %v696, 0.0
    %v715 = vpack.c.bf16 %v700, %v699
    %v716 = vpack.c.bf16 %v702, %v701
    %v717 = vpack.c.bf16 %v704, %v703
    %v718 = vpack.c.bf16 %v706, %v705
    %v719 = vpack.c.bf16 %v708, %v707
    %v720 = vpack.c.bf16 %v710, %v709
    %v721 = vpack.c.bf16 %v712, %v711
    %v722 = vpack.c.bf16 %v714, %v713
    %s723 = scalar_lea.vmem [#allocation2], 128
    %v724 = vld [vmem:[%s723] sm:$0xf]
    %v725 = vld [vmem:[%s723 + $0x4] sm:$0xf]
    %v726 = vld [vmem:[%s723 + $0x8] sm:$0xf]
    %v727 = vld [vmem:[%s723 + $0xc] sm:$0xf]
    %v728 = vld [vmem:[%s723 + $0x10] sm:$0xf]
    %v729 = vld [vmem:[%s723 + $0x14] sm:$0xf]
    %v730 = vld [vmem:[%s723 + $0x18] sm:$0xf]
    %v731 = vld [vmem:[%s723 + $0x1c] sm:$0xf]
    %v732 = vld [vmem:[%s723 + $0x20] sm:$0xf]
    %v733 = vld [vmem:[%s723 + $0x24] sm:$0xf]
    %v734 = vld [vmem:[%s723 + $0x28] sm:$0xf]
    %v735 = vld [vmem:[%s723 + $0x2c] sm:$0xf]
    %v736 = vld [vmem:[%s723 + $0x30] sm:$0xf]
    %v737 = vld [vmem:[%s723 + $0x34] sm:$0xf]
    %v738 = vld [vmem:[%s723 + $0x38] sm:$0xf]
    %v739 = vld [vmem:[%s723 + $0x3c] sm:$0xf]
    %v740 = vlaneseq
    %v741 = vshrl.u32 %v740, 7
    %v742 = vsub.s32 0, %v741
    %v743 = vrot.slane %v56, %v742
    %v760 = vunpack.c.l.b16 %v724
    %v761 = vunpack.c.l.b16 %v725
    %v762 = vunpack.c.l.b16 %v726
    %v763 = vunpack.c.l.b16 %v727
    %v764 = vunpack.c.l.b16 %v728
    %v765 = vunpack.c.l.b16 %v729
    %v766 = vunpack.c.l.b16 %v730
    %v767 = vunpack.c.l.b16 %v731
    %v768 = vunpack.c.l.b16 %v732
    %v769 = vunpack.c.l.b16 %v733
    %v770 = vunpack.c.l.b16 %v734
    %v771 = vunpack.c.l.b16 %v735
    %v772 = vunpack.c.l.b16 %v736
    %v773 = vunpack.c.l.b16 %v737
    %v774 = vunpack.c.l.b16 %v738
    %v775 = vunpack.c.l.b16 %v739
    %v776 = vpack.c.b16 %v761, %v760
    %v777 = vpack.c.b16 %v763, %v762
    %v778 = vpack.c.b16 %v765, %v764
    %v779 = vpack.c.b16 %v767, %v766
    %v780 = vpack.c.b16 %v769, %v768
    %v781 = vpack.c.b16 %v771, %v770
    %v782 = vpack.c.b16 %v773, %v772
    %v783 = vpack.c.b16 %v775, %v774
    %792 = vmatprep.subr.bf16.mxu0 0
    %793 = vmatpush1.bf16.msra.mxu0 %v776
    %794 = vmatprep.subr.bf16.mxu0 0
    %795 = vmatpush1.bf16.msra.mxu0 %v777
    %796 = vmatprep.subr.bf16.mxu0 0
    %797 = vmatpush1.bf16.msra.mxu0 %v778
    %798 = vmatprep.subr.bf16.mxu0 0
    %799 = vmatpush1.bf16.msra.mxu0 %v779
    %800 = vmatprep.subr.bf16.mxu0 0
    %801 = vmatpush1.bf16.msra.mxu0 %v780
    %802 = vmatprep.subr.bf16.mxu0 0
    %803 = vmatpush1.bf16.msra.mxu0 %v781
    %804 = vmatprep.subr.bf16.mxu0 0
    %805 = vmatpush1.bf16.msra.mxu0 %v782
    %806 = vmatprep.subr.bf16.mxu0 0
    %807 = vmatpush1.bf16.msra.mxu0 %v783
    %808 = vmatprep.subr.bf16.mxu0 0
    %809 = vmatpush1.bf16.msra.mxu0 0
    %810 = vmatprep.subr.bf16.mxu0 0
    %811 = vmatpush1.bf16.msra.mxu0 0
    %812 = vmatprep.subr.bf16.mxu0 0
    %813 = vmatpush1.bf16.msra.mxu0 0
    %814 = vmatprep.subr.bf16.mxu0 0
    %815 = vmatpush1.bf16.msra.mxu0 0
    %816 = vmatprep.subr.bf16.mxu0 0
    %817 = vmatpush1.bf16.msra.mxu0 0
    %818 = vmatprep.subr.bf16.mxu0 0
    %819 = vmatpush1.bf16.msra.mxu0 0
    %820 = vmatprep.subr.bf16.mxu0 0
    %821 = vmatpush1.bf16.msra.mxu0 0
    %822 = vmatprep.subr.bf16.mxu0 0
    %823 = vmatpush1.bf16.msra.mxu0 0
    %824 = vmatprep.mubr.bf16.mxu0 0
    %825 = vmatmul.mubr.bf16.gmra.mrb[0].mxu0 %v715
    %v826 = vpop.f32.mrb[0].mxu0
    %v827 = vadd.f32 %v743, %v826
    %v828 = vpop.f32.mrb[0].mxu0
    %v829 = vpop.f32.mrb[0].mxu0
    %v830 = vadd.f32 %v743, %v829
    %v831 = vpop.f32.mrb[0].mxu0
    %832 = vmatprep.mubr.bf16.mxu0 0
    %833 = vmatmul.mubr.bf16.gmra.mrb[0].mxu0 %v716
    %v834 = vpop.f32.mrb[0].mxu0
    %v835 = vadd.f32 %v743, %v834
    %v836 = vpop.f32.mrb[0].mxu0
    %v837 = vpop.f32.mrb[0].mxu0
    %v838 = vadd.f32 %v743, %v837
    %v839 = vpop.f32.mrb[0].mxu0
    %840 = vmatprep.mubr.bf16.mxu0 0
    %841 = vmatmul.mubr.bf16.gmra.mrb[0].mxu0 %v717
    %v842 = vpop.f32.mrb[0].mxu0
    %v843 = vadd.f32 %v743, %v842
    %v844 = vpop.f32.mrb[0].mxu0
    %v845 = vpop.f32.mrb[0].mxu0
    %v846 = vadd.f32 %v743, %v845
    %v847 = vpop.f32.mrb[0].mxu0
    %848 = vmatprep.mubr.bf16.mxu0 0
    %849 = vmatmul.mubr.bf16.gmra.mrb[0].mxu0 %v718
    %v850 = vpop.f32.mrb[0].mxu0
    %v851 = vadd.f32 %v743, %v850
    %v852 = vpop.f32.mrb[0].mxu0
    %v853 = vpop.f32.mrb[0].mxu0
    %v854 = vadd.f32 %v743, %v853
    %v855 = vpop.f32.mrb[0].mxu0
    %856 = vmatprep.mubr.bf16.mxu0 0
    %857 = vmatmul.mubr.bf16.gmra.mrb[0].mxu0 %v719
    %v858 = vpop.f32.mrb[0].mxu0
    %v859 = vadd.f32 %v743, %v858
    %v860 = vpop.f32.mrb[0].mxu0
    %v861 = vpop.f32.mrb[0].mxu0
    %v862 = vadd.f32 %v743, %v861
    %v863 = vpop.f32.mrb[0].mxu0
    %864 = vmatprep.mubr.bf16.mxu0 0
    %865 = vmatmul.mubr.bf16.gmra.mrb[0].mxu0 %v720
    %v866 = vpop.f32.mrb[0].mxu0
    %v867 = vadd.f32 %v743, %v866
    %v868 = vpop.f32.mrb[0].mxu0
    %v869 = vpop.f32.mrb[0].mxu0
    %v870 = vadd.f32 %v743, %v869
    %v871 = vpop.f32.mrb[0].mxu0
    %872 = vmatprep.mubr.bf16.mxu0 0
    %873 = vmatmul.mubr.bf16.gmra.mrb[0].mxu0 %v721
    %v874 = vpop.f32.mrb[0].mxu0
    %v875 = vadd.f32 %v743, %v874
    %v876 = vpop.f32.mrb[0].mxu0
    %v877 = vpop.f32.mrb[0].mxu0
    %v878 = vadd.f32 %v743, %v877
    %v879 = vpop.f32.mrb[0].mxu0
    %880 = vmatprep.mubr.bf16.mxu0 0
    %881 = vmatmul.mubr.bf16.gmra.mrb[0].mxu0 %v722
    %v882 = vpop.f32.mrb[0].mxu0
    %v883 = vadd.f32 %v743, %v882
    %v884 = vpop.f32.mrb[0].mxu0
    %v885 = vpop.f32.mrb[0].mxu0
    %v886 = vadd.f32 %v743, %v885
    %v887 = vpop.f32.mrb[0].mxu0
    %888 = vdwg.mxu0
    %v889 = vmax.f32 %v827, 0.0
    %v890 = vmax.f32 %v830, 0.0
    %v891 = vmax.f32 %v835, 0.0
    %v892 = vmax.f32 %v838, 0.0
    %v893 = vmax.f32 %v843, 0.0
    %v894 = vmax.f32 %v846, 0.0
    %v895 = vmax.f32 %v851, 0.0
    %v896 = vmax.f32 %v854, 0.0
    %v897 = vmax.f32 %v859, 0.0
    %v898 = vmax.f32 %v862, 0.0
    %v899 = vmax.f32 %v867, 0.0
    %v900 = vmax.f32 %v870, 0.0
    %v901 = vmax.f32 %v875, 0.0
    %v902 = vmax.f32 %v878, 0.0
    %v903 = vmax.f32 %v883, 0.0
    %v904 = vmax.f32 %v886, 0.0
    %v905 = vpack.c.bf16 %v890, %v889
    %v906 = vpack.c.bf16 %v892, %v891
    %v907 = vpack.c.bf16 %v894, %v893
    %v908 = vpack.c.bf16 %v896, %v895
    %v909 = vpack.c.bf16 %v898, %v897
    %v910 = vpack.c.bf16 %v900, %v899
    %v911 = vpack.c.bf16 %v902, %v901
    %v912 = vpack.c.bf16 %v904, %v903
    %s913 = scalar_lea.vmem [#allocation2], 192
    %v914 = vld [vmem:[%s913] sm:$0xf]
    %v915 = vld [vmem:[%s913 + $0x4] sm:$0xf]
    %v916 = vld [vmem:[%s913 + $0x8] sm:$0xf]
    %v917 = vld [vmem:[%s913 + $0xc] sm:$0xf]
    %v918 = vld [vmem:[%s913 + $0x10] sm:$0xf]
    %v919 = vld [vmem:[%s913 + $0x14] sm:$0xf]
    %v920 = vld [vmem:[%s913 + $0x18] sm:$0xf]
    %v921 = vld [vmem:[%s913 + $0x1c] sm:$0xf]
    %v922 = vld [vmem:[%s913 + $0x20] sm:$0xf]
    %v923 = vld [vmem:[%s913 + $0x24] sm:$0xf]
    %v924 = vld [vmem:[%s913 + $0x28] sm:$0xf]
    %v925 = vld [vmem:[%s913 + $0x2c] sm:$0xf]
    %v926 = vld [vmem:[%s913 + $0x30] sm:$0xf]
    %v927 = vld [vmem:[%s913 + $0x34] sm:$0xf]
    %v928 = vld [vmem:[%s913 + $0x38] sm:$0xf]
    %v929 = vld [vmem:[%s913 + $0x3c] sm:$0xf]
    %v930 = vlaneseq
    %v931 = vshrl.u32 %v930, 7
    %v932 = vsub.s32 0, %v931
    %v933 = vrot.slane %v57, %v932
    %v950 = vunpack.c.l.b16 %v914
    %v951 = vunpack.c.l.b16 %v915
    %v952 = vunpack.c.l.b16 %v916
    %v953 = vunpack.c.l.b16 %v917
    %v954 = vunpack.c.l.b16 %v918
    %v955 = vunpack.c.l.b16 %v919
    %v956 = vunpack.c.l.b16 %v920
    %v957 = vunpack.c.l.b16 %v921
    %v958 = vunpack.c.l.b16 %v922
    %v959 = vunpack.c.l.b16 %v923
    %v960 = vunpack.c.l.b16 %v924
    %v961 = vunpack.c.l.b16 %v925
    %v962 = vunpack.c.l.b16 %v926
    %v963 = vunpack.c.l.b16 %v927
    %v964 = vunpack.c.l.b16 %v928
    %v965 = vunpack.c.l.b16 %v929
    %v966 = vpack.c.b16 %v951, %v950
    %v967 = vpack.c.b16 %v953, %v952
    %v968 = vpack.c.b16 %v955, %v954
    %v969 = vpack.c.b16 %v957, %v956
    %v970 = vpack.c.b16 %v959, %v958
    %v971 = vpack.c.b16 %v961, %v960
    %v972 = vpack.c.b16 %v963, %v962
    %v973 = vpack.c.b16 %v965, %v964
    %982 = vmatprep.subr.bf16.mxu0 0
    %983 = vmatpush1.bf16.msra.mxu0 %v966
    %984 = vmatprep.subr.bf16.mxu0 0
    %985 = vmatpush1.bf16.msra.mxu0 %v967
    %986 = vmatprep.subr.bf16.mxu0 0
    %987 = vmatpush1.bf16.msra.mxu0 %v968
    %988 = vmatprep.subr.bf16.mxu0 0
    %989 = vmatpush1.bf16.msra.mxu0 %v969
    %990 = vmatprep.subr.bf16.mxu0 0
    %991 = vmatpush1.bf16.msra.mxu0 %v970
    %992 = vmatprep.subr.bf16.mxu0 0
    %993 = vmatpush1.bf16.msra.mxu0 %v971
    %994 = vmatprep.subr.bf16.mxu0 0
    %995 = vmatpush1.bf16.msra.mxu0 %v972
    %996 = vmatprep.subr.bf16.mxu0 0
    %997 = vmatpush1.bf16.msra.mxu0 %v973
    %998 = vmatprep.subr.bf16.mxu0 0
    %999 = vmatpush1.bf16.msra.mxu0 0
    %1000 = vmatprep.subr.bf16.mxu0 0
    %1001 = vmatpush1.bf16.msra.mxu0 0
    %1002 = vmatprep.subr.bf16.mxu0 0
    %1003 = vmatpush1.bf16.msra.mxu0 0
    %1004 = vmatprep.subr.bf16.mxu0 0
    %1005 = vmatpush1.bf16.msra.mxu0 0
    %1006 = vmatprep.subr.bf16.mxu0 0
    %1007 = vmatpush1.bf16.msra.mxu0 0
    %1008 = vmatprep.subr.bf16.mxu0 0
    %1009 = vmatpush1.bf16.msra.mxu0 0
    %1010 = vmatprep.subr.bf16.mxu0 0
    %1011 = vmatpush1.bf16.msra.mxu0 0
    %1012 = vmatprep.subr.bf16.mxu0 0
    %1013 = vmatpush1.bf16.msra.mxu0 0
    %1014 = vmatprep.mubr.bf16.mxu0 0
    %1015 = vmatmul.mubr.bf16.gmra.mrb[0].mxu0 %v905
    %v1016 = vpop.f32.mrb[0].mxu0
    %v1017 = vadd.f32 %v933, %v1016
    %v1018 = vpop.f32.mrb[0].mxu0
    %v1019 = vpop.f32.mrb[0].mxu0
    %v1020 = vadd.f32 %v933, %v1019
    %v1021 = vpop.f32.mrb[0].mxu0
    %1022 = vmatprep.mubr.bf16.mxu0 0
    %1023 = vmatmul.mubr.bf16.gmra.mrb[0].mxu0 %v906
    %v1024 = vpop.f32.mrb[0].mxu0
    %v1025 = vadd.f32 %v933, %v1024
    %v1026 = vpop.f32.mrb[0].mxu0
    %v1027 = vpop.f32.mrb[0].mxu0
    %v1028 = vadd.f32 %v933, %v1027
    %v1029 = vpop.f32.mrb[0].mxu0
    %1030 = vmatprep.mubr.bf16.mxu0 0
    %1031 = vmatmul.mubr.bf16.gmra.mrb[0].mxu0 %v907
    %v1032 = vpop.f32.mrb[0].mxu0
    %v1033 = vadd.f32 %v933, %v1032
    %v1034 = vpop.f32.mrb[0].mxu0
    %v1035 = vpop.f32.mrb[0].mxu0
    %v1036 = vadd.f32 %v933, %v1035
    %v1037 = vpop.f32.mrb[0].mxu0
    %1038 = vmatprep.mubr.bf16.mxu0 0
    %1039 = vmatmul.mubr.bf16.gmra.mrb[0].mxu0 %v908
    %v1040 = vpop.f32.mrb[0].mxu0
    %v1041 = vadd.f32 %v933, %v1040
    %v1042 = vpop.f32.mrb[0].mxu0
    %v1043 = vpop.f32.mrb[0].mxu0
    %v1044 = vadd.f32 %v933, %v1043
    %v1045 = vpop.f32.mrb[0].mxu0
    %1046 = vmatprep.mubr.bf16.mxu0 0
    %1047 = vmatmul.mubr.bf16.gmra.mrb[0].mxu0 %v909
    %v1048 = vpop.f32.mrb[0].mxu0
    %v1049 = vadd.f32 %v933, %v1048
    %v1050 = vpop.f32.mrb[0].mxu0
    %v1051 = vpop.f32.mrb[0].mxu0
    %v1052 = vadd.f32 %v933, %v1051
    %v1053 = vpop.f32.mrb[0].mxu0
    %1054 = vmatprep.mubr.bf16.mxu0 0
    %1055 = vmatmul.mubr.bf16.gmra.mrb[0].mxu0 %v910
    %v1056 = vpop.f32.mrb[0].mxu0
    %v1057 = vadd.f32 %v933, %v1056
    %v1058 = vpop.f32.mrb[0].mxu0
    %v1059 = vpop.f32.mrb[0].mxu0
    %v1060 = vadd.f32 %v933, %v1059
    %v1061 = vpop.f32.mrb[0].mxu0
    %1062 = vmatprep.mubr.bf16.mxu0 0
    %1063 = vmatmul.mubr.bf16.gmra.mrb[0].mxu0 %v911
    %v1064 = vpop.f32.mrb[0].mxu0
    %v1065 = vadd.f32 %v933, %v1064
    %v1066 = vpop.f32.mrb[0].mxu0
    %v1067 = vpop.f32.mrb[0].mxu0
    %v1068 = vadd.f32 %v933, %v1067
    %v1069 = vpop.f32.mrb[0].mxu0
    %1070 = vmatprep.mubr.bf16.mxu0 0
    %1071 = vmatmul.mubr.bf16.gmra.mrb[0].mxu0 %v912
    %v1072 = vpop.f32.mrb[0].mxu0
    %v1073 = vadd.f32 %v933, %v1072
    %v1074 = vpop.f32.mrb[0].mxu0
    %v1075 = vpop.f32.mrb[0].mxu0
    %v1076 = vadd.f32 %v933, %v1075
    %v1077 = vpop.f32.mrb[0].mxu0
    %1078 = vdwg.mxu0
    %v1079 = vpack.c.bf16 %v1020, %v1017
    %v1080 = vpack.c.bf16 %v1028, %v1025
    %v1081 = vpack.c.bf16 %v1036, %v1033
    %v1082 = vpack.c.bf16 %v1044, %v1041
    %v1083 = vpack.c.bf16 %v1052, %v1049
    %v1084 = vpack.c.bf16 %v1060, %v1057
    %v1085 = vpack.c.bf16 %v1068, %v1065
    %v1086 = vpack.c.bf16 %v1076, %v1073
    %v1095 = vunpack.c.l.b16 %v1079
    %v1096 = vunpack.c.h.b16 %v1079
    %v1097 = vunpack.c.l.b16 %v1080
    %v1098 = vunpack.c.h.b16 %v1080
    %v1099 = vunpack.c.l.b16 %v1081
    %v1100 = vunpack.c.h.b16 %v1081
    %v1101 = vunpack.c.l.b16 %v1082
    %v1102 = vunpack.c.h.b16 %v1082
    %v1103 = vunpack.c.l.b16 %v1083
    %v1104 = vunpack.c.h.b16 %v1083
    %v1105 = vunpack.c.l.b16 %v1084
    %v1106 = vunpack.c.h.b16 %v1084
    %v1107 = vunpack.c.l.b16 %v1085
    %v1108 = vunpack.c.h.b16 %v1085
    %v1109 = vunpack.c.l.b16 %v1086
    %v1110 = vunpack.c.h.b16 %v1086
    %v1111 = vpack.c.b16 %v1095, %v1095
    %v1112 = vpack.c.b16 %v1096, %v1096
    %v1113 = vpack.c.b16 %v1097, %v1097
    %v1114 = vpack.c.b16 %v1098, %v1098
    %v1115 = vpack.c.b16 %v1099, %v1099
    %v1116 = vpack.c.b16 %v1100, %v1100
    %v1117 = vpack.c.b16 %v1101, %v1101
    %v1118 = vpack.c.b16 %v1102, %v1102
    %v1119 = vpack.c.b16 %v1103, %v1103
    %v1120 = vpack.c.b16 %v1104, %v1104
    %v1121 = vpack.c.b16 %v1105, %v1105
    %v1122 = vpack.c.b16 %v1106, %v1106
    %v1123 = vpack.c.b16 %v1107, %v1107
    %v1124 = vpack.c.b16 %v1108, %v1108
    %v1125 = vpack.c.b16 %v1109, %v1109
    %v1126 = vpack.c.b16 %v1110, %v1110
    %1143 = vst [vmem:[#allocation5] sm:$0xf] %v1111
    %1144 = vst [vmem:[#allocation5 + $0x4] sm:$0xf] %v1112
    %1145 = vst [vmem:[#allocation5 + $0x8] sm:$0xf] %v1113
    %1146 = vst [vmem:[#allocation5 + $0xc] sm:$0xf] %v1114
    %1147 = vst [vmem:[#allocation5 + $0x10] sm:$0xf] %v1115
    %1148 = vst [vmem:[#allocation5 + $0x14] sm:$0xf] %v1116
    %1149 = vst [vmem:[#allocation5 + $0x18] sm:$0xf] %v1117
    %1150 = vst [vmem:[#allocation5 + $0x1c] sm:$0xf] %v1118
    %1151 = vst [vmem:[#allocation5 + $0x20] sm:$0xf] %v1119
    %1152 = vst [vmem:[#allocation5 + $0x24] sm:$0xf] %v1120
    %1153 = vst [vmem:[#allocation5 + $0x28] sm:$0xf] %v1121
    %1154 = vst [vmem:[#allocation5 + $0x2c] sm:$0xf] %v1122
    %1155 = vst [vmem:[#allocation5 + $0x30] sm:$0xf] %v1123
    %1156 = vst [vmem:[#allocation5 + $0x34] sm:$0xf] %v1124
    %1157 = vst [vmem:[#allocation5 + $0x38] sm:$0xf] %v1125
    %1158 = vst [vmem:[#allocation5 + $0x3c] sm:$0xf] %v1126
    // Predicated region
    $region22: #{tpu_custom_call.1} parent=1 // pred_check
      _
    $region23: #{tpu_custom_call.1} parent=1 // pred_check_branch
      %1160 = sbr.rel (0) target = $region25
    $region24: #{tpu_custom_call.1} parent=1 // pred_region
      %s1162 = ssub.s32 1024, 1024
      %1163 = vsyncadd [#allocation4], %s1162
      %s1164 = sshll.u32 [#allocation5], 4
      %s1165 = int_to_ptr.vmem [resolvable:$true] %s1164
      %1170 = dma.vmem_to_hbm [thread:$0]  %s1165, 1024, %s4, [#allocation4], 64, 64, 4
    $region25: #{tpu_custom_call.1} parent=1 // pred_fallthru
      _
    // Predicated region
    $region26: #{tpu_custom_call.1} parent=1 // pred_check
      _
    $region27: #{tpu_custom_call.1} parent=1 // pred_check_branch
      %1172 = sbr.rel (0) target = $region29
    $region28: #{tpu_custom_call.1} parent=1 // pred_region
      %1173 = dma.done [#allocation4], 1024
    $region29: #{tpu_custom_call.1} parent=1 // pred_fallthru
      _
    %1174 = vsyncpa [#allocation3], 1
    %1175 = vsyncpa [#allocation4], 1

</llo_original>
